<compile_context>
chip_gen: v7x
topology: tpu7x:2x2x1
jax: 0.10.0
libtpu: 0.0.40
codegen_flags: <defaults>
</compile_context>

<pallas_src>
import jax
import jax.numpy as jnp
from jax.experimental import pallas as pl
from jax.experimental.pallas import tpu as pltpu


def transformer_encoder_kernel(
    x_ref, biaspos_ref,
    we_ref,
    wqkv_ref, bqkv_ref,
    wo_ref, bo_ref,
    w1_ref, b1_ref,
    w2_ref, b2_ref,
    out_ref,
):
    BB, S, D_in = x_ref.shape
    H = we_ref.shape[1]
    Opad = w2_ref.shape[1]
    cdt = we_ref.dtype            # matmul-input dtype (bf16); accumulation f32

    # ---- embedding + (bias + positional encoding) fused in wrapper ---------
    x2 = x_ref[...].reshape(BB * S, D_in).astype(cdt)
    e = jnp.dot(x2, we_ref[...], preferred_element_type=jnp.float32)
    e = e.reshape(BB, S, H) + biaspos_ref[...]                 # (BB, S, H) f32

    # ---- fused Q/K/V projection ---------------------------------------------
    e2 = e.reshape(BB * S, H).astype(cdt)
    qkv = jnp.dot(e2, wqkv_ref[...], preferred_element_type=jnp.float32)
    qkv = qkv + bqkv_ref[...]                                  # (BB*S, 3H) f32
    q = qkv[:, 0 * H:1 * H].reshape(BB, S, H)
    k = qkv[:, 1 * H:2 * H].reshape(BB, S, H)
    v = qkv[:, 2 * H:3 * H].reshape(BB, S, H)

    # ---- single-head scaled-dot-product attention (batched over BB) --------
    scale = 1.0 / (float(H) ** 0.5)                            # head_dim == H
    scores = jnp.einsum("bqh,bkh->bqk",
                        (q * scale).astype(cdt), k.astype(cdt),
                        preferred_element_type=jnp.float32)    # (BB, S, S)
    scores = scores - jnp.max(scores, axis=-1, keepdims=True)
    p = jnp.exp(scores)                                        # f32 softmax
    p = p * pl.reciprocal(jnp.sum(p, axis=-1, keepdims=True), approx=True)
    attn = jnp.einsum("bqk,bkh->bqh", p.astype(cdt), v.astype(cdt),
                      preferred_element_type=jnp.float32)      # (BB, S, H)

    a = jnp.dot(attn.reshape(BB * S, H).astype(cdt), wo_ref[...],
                preferred_element_type=jnp.float32) + bo_ref[...]

    # ---- feed-forward MLP (second Linear lane-padded to Opad) ---------------
    h = jnp.dot(a.astype(cdt), w1_ref[...],
                preferred_element_type=jnp.float32) + b1_ref[...]
    h = jnp.maximum(h, 0.0)                                    # ReLU
    out = jnp.dot(h.astype(cdt), w2_ref[...],
                  preferred_element_type=jnp.float32) + b2_ref[...]

    out_ref[...] = out.reshape(BB, S, Opad)


def transformer_encoder(x, params, *, block_b=None, compute_dtype=jnp.bfloat16):
    B, S, D_in = x.shape
    H = params["we"].shape[1]
    O = params["w2"].shape[1]
    Opad = -(-O // 128) * 128                 # lane-dense output width (>=128)

    if block_b is None:
        block_b = B                           # whole batch per grid step
    assert B % block_b == 0, "block_b must divide B"
    nb = B // block_b

    wdt = compute_dtype
    # Fuse embedding bias with the positional encoding -> one (S, H) operand.
    biaspos = (params["be"][None, :] + params["pos"][0, :S, :]).astype(jnp.float32)
    # Fuse Q/K/V projections -> one (H, 3H) weight + (1, 3H) bias.
    wqkv = jnp.concatenate([params["wq"], params["wk"], params["wv"]],
                           axis=1).astype(wdt)
    bqkv = jnp.concatenate([params["bq"], params["bk"], params["bv"]])[None, :]
    # Zero-pad the final projection to a 128-lane output block.
    w2p = jnp.pad(params["w2"], ((0, 0), (0, Opad - O))).astype(wdt)
    b2p = jnp.pad(params["b2"], (0, Opad - O))[None, :]

    args = [
        x, biaspos,
        params["we"].astype(wdt),
        wqkv, bqkv,
        params["wo"].astype(wdt), params["bo"][None, :],
        params["w1"].astype(wdt), params["b1"][None, :],
        w2p, b2p,
    ]

    def const_spec(shape):
        return pl.BlockSpec(shape, lambda b, _z=(0,) * len(shape): _z)

    in_specs = [pl.BlockSpec((block_b, S, D_in), lambda b: (b, 0, 0))] + [
        const_spec(a.shape) for a in args[1:]
    ]
    out_specs = pl.BlockSpec((block_b, S, Opad), lambda b: (b, 0, 0))

    out = pl.pallas_call(
        transformer_encoder_kernel,
        out_shape=jax.ShapeDtypeStruct((B, S, Opad), jnp.float32),
        grid_spec=pltpu.PrefetchScalarGridSpec(
            num_scalar_prefetch=0,
            grid=(nb,),
            in_specs=in_specs,
            out_specs=out_specs,
        ),
        compiler_params=pltpu.CompilerParams(
            # Batch blocks are independent -> megacore-shardable on v7x.
            dimension_semantics=("parallel",)),
    )(*args)
    # TODO(synk): at large H / block_b, single-buffer the constant weight
    # operands (pipeline_mode=pl.Buffered(1)) and set vmem_limit_bytes for v7x.
    return out[..., :O]


def reference(x, params):
    """Pure-JAX f32 reference matching the PyTorch forward."""
    S = x.shape[1]
    e = x @ params["we"] + params["be"] + params["pos"][:, :S, :]
    q = e @ params["wq"] + params["bq"]
    k = e @ params["wk"] + params["bk"]
    v = e @ params["wv"] + params["bv"]
    scale = 1.0 / (float(q.shape[-1]) ** 0.5)
    scores = jnp.einsum("bqh,bkh->bqk", q * scale, k)
    p = jax.nn.softmax(scores, axis=-1)
    attn = jnp.einsum("bqk,bkh->bqh", p, v)
    attn = attn @ params["wo"] + params["bo"]
    h = jax.nn.relu(attn @ params["w1"] + params["b1"])
    return h @ params["w2"] + params["b2"]


def init_params(key, input_dim, hidden_dim, output_dim):
    # All Linear weights stored pre-transposed (in, out): y = x @ W + b.
    ks = jax.random.split(key, 10)
    s = 0.05
    params = {
        "we": jax.random.normal(ks[0], (input_dim, hidden_dim), jnp.float32) * s,
        "be": jax.random.normal(ks[1], (hidden_dim,), jnp.float32) * s,
        # positional_encoding is zero-initialized in the module's __init__.
        "pos": jnp.zeros((1, 1000, hidden_dim), jnp.float32),
        # MultiheadAttention in_proj (q, k, v) and out_proj (num_heads=1).
        "wq": jax.random.normal(ks[2], (hidden_dim, hidden_dim), jnp.float32) * s,
        "bq": jax.random.normal(ks[3], (hidden_dim,), jnp.float32) * s,
        "wk": jax.random.normal(ks[4], (hidden_dim, hidden_dim), jnp.float32) * s,
        "bk": jax.random.normal(ks[5], (hidden_dim,), jnp.float32) * s,
        "wv": jax.random.normal(ks[6], (hidden_dim, hidden_dim), jnp.float32) * s,
        "bv": jax.random.normal(ks[7], (hidden_dim,), jnp.float32) * s,
        "wo": jax.random.normal(ks[8], (hidden_dim, hidden_dim), jnp.float32) * s,
        "bo": jnp.zeros((hidden_dim,), jnp.float32),
        # feed_forward: Linear(H,H) -> ReLU -> Linear(H,O)
        "w1": jax.random.normal(ks[9], (hidden_dim, hidden_dim), jnp.float32) * s,
        "b1": jnp.full((hidden_dim,), 0.01, jnp.float32),
        "w2": jax.random.normal(jax.random.fold_in(key, 99),
                                (hidden_dim, output_dim), jnp.float32) * s,
        "b2": jnp.full((output_dim,), -0.01, jnp.float32),
    }
    return params


if __name__ == "__main__":
    B, S = 2, 8
    input_dim, hidden_dim, output_dim = 16, 32, 16

    key = jax.random.PRNGKey(0)
    kx, kp = jax.random.split(key)
    x = jax.random.normal(kx, (B, S, input_dim), jnp.float32)
    params = init_params(kp, input_dim, hidden_dim, output_dim)

    out = jax.block_until_ready(transformer_encoder(x, params))
    ref = jax.block_until_ready(reference(x, params))

    assert out.shape == (B, S, output_dim), out.shape
    # bf16 matmul inputs with f32 accumulation + approx reciprocal -> loose tol.
    err = float(jnp.max(jnp.abs(out - ref)))
    assert err < 1e-2, err

    print("KERNEL_OK")
</pallas_src>

<mosaic_0001>
module attributes {stable_mosaic.version = 11 : i64} {
  func.func @transformer_encoder_kernel(%arg0: i32, %arg1: memref<2x8x16xf32, #tpu.memory_space<vmem>>, %arg2: memref<8x32xf32, #tpu.memory_space<vmem>>, %arg3: memref<16x32xbf16, #tpu.memory_space<vmem>>, %arg4: memref<32x96xbf16, #tpu.memory_space<vmem>>, %arg5: memref<1x96xf32, #tpu.memory_space<vmem>>, %arg6: memref<32x32xbf16, #tpu.memory_space<vmem>>, %arg7: memref<1x32xf32, #tpu.memory_space<vmem>>, %arg8: memref<32x32xbf16, #tpu.memory_space<vmem>>, %arg9: memref<1x32xf32, #tpu.memory_space<vmem>>, %arg10: memref<32x128xbf16, #tpu.memory_space<vmem>>, %arg11: memref<1x128xf32, #tpu.memory_space<vmem>>, %arg12: memref<2x8x128xf32, #tpu.memory_space<vmem>>) attributes {dimension_semantics = [#tpu.dimension_semantics<parallel>], iteration_bounds = array<i64: 1>, scalar_prefetch = 0 : i64, scratch_operands = 0 : i64, tpu.core_type = #tpu.core_type<tc>, window_params = [{transform_indices = @transform_0, window_bounds = array<i64: 2, 8, 16>}, {pipeline_mode = #tpu.pipeline_mode<synchronous>, transform_indices = @transform_1, window_bounds = array<i64: 8, 32>}, {pipeline_mode = #tpu.pipeline_mode<synchronous>, transform_indices = @transform_2, window_bounds = array<i64: 16, 32>}, {pipeline_mode = #tpu.pipeline_mode<synchronous>, transform_indices = @transform_3, window_bounds = array<i64: 32, 96>}, {pipeline_mode = #tpu.pipeline_mode<synchronous>, transform_indices = @transform_4, window_bounds = array<i64: 1, 96>}, {pipeline_mode = #tpu.pipeline_mode<synchronous>, transform_indices = @transform_5, window_bounds = array<i64: 32, 32>}, {pipeline_mode = #tpu.pipeline_mode<synchronous>, transform_indices = @transform_6, window_bounds = array<i64: 1, 32>}, {pipeline_mode = #tpu.pipeline_mode<synchronous>, transform_indices = @transform_7, window_bounds = array<i64: 32, 32>}, {pipeline_mode = #tpu.pipeline_mode<synchronous>, transform_indices = @transform_8, window_bounds = array<i64: 1, 32>}, {pipeline_mode = #tpu.pipeline_mode<synchronous>, transform_indices = @transform_9, window_bounds = array<i64: 32, 128>}, {pipeline_mode = #tpu.pipeline_mode<synchronous>, transform_indices = @transform_10, window_bounds = array<i64: 1, 128>}, {transform_indices = @transform_11, window_bounds = array<i64: 2, 8, 128>}]} {
    %c0 = arith.constant 0 : index
    %c0_0 = arith.constant 0 : index
    %c0_1 = arith.constant 0 : index
    %0 = vector.load %arg1[%c0, %c0_0, %c0_1] : memref<2x8x16xf32, #tpu.memory_space<vmem>>, vector<2x8x16xf32>
    %1 = vector.shape_cast %0 : vector<2x8x16xf32> to vector<16x16xf32>
    %2 = arith.truncf %1 : vector<16x16xf32> to vector<16x16xbf16>
    %c0_2 = arith.constant 0 : index
    %c0_3 = arith.constant 0 : index
    %3 = vector.load %arg3[%c0_2, %c0_3] : memref<16x32xbf16, #tpu.memory_space<vmem>>, vector<16x32xbf16>
    %cst = arith.constant dense<0.000000e+00> : vector<16x32xf32>
    %4 = tpu.matmul %2, %3, %cst {dimension_numbers = #tpu.dot_dimension_numbers<[1], [0], [0], [1], [0, 0, 1, 1], [], []>} : vector<16x16xbf16>, vector<16x32xbf16>, vector<16x32xf32> -> vector<16x32xf32>
    %5 = vector.shape_cast %4 : vector<16x32xf32> to vector<2x8x32xf32>
    %c0_4 = arith.constant 0 : index
    %c0_5 = arith.constant 0 : index
    %6 = vector.load %arg2[%c0_4, %c0_5] : memref<8x32xf32, #tpu.memory_space<vmem>>, vector<8x32xf32>
    %7 = vector.shape_cast %6 : vector<8x32xf32> to vector<1x8x32xf32>
    %8 = vector.broadcast %7 : vector<1x8x32xf32> to vector<2x8x32xf32>
    %9 = arith.addf %5, %8 : vector<2x8x32xf32>
    %10 = vector.shape_cast %9 : vector<2x8x32xf32> to vector<16x32xf32>
    %11 = arith.truncf %10 : vector<16x32xf32> to vector<16x32xbf16>
    %c0_6 = arith.constant 0 : index
    %c0_7 = arith.constant 0 : index
    %12 = vector.load %arg4[%c0_6, %c0_7] : memref<32x96xbf16, #tpu.memory_space<vmem>>, vector<32x96xbf16>
    %cst_8 = arith.constant dense<0.000000e+00> : vector<16x96xf32>
    %13 = tpu.matmul %11, %12, %cst_8 {dimension_numbers = #tpu.dot_dimension_numbers<[1], [0], [0], [1], [0, 0, 1, 1], [], []>} : vector<16x32xbf16>, vector<32x96xbf16>, vector<16x96xf32> -> vector<16x96xf32>
    %c0_9 = arith.constant 0 : index
    %c0_10 = arith.constant 0 : index
    %14 = vector.load %arg5[%c0_9, %c0_10] : memref<1x96xf32, #tpu.memory_space<vmem>>, vector<1x96xf32>
    %15 = vector.broadcast %14 : vector<1x96xf32> to vector<16x96xf32>
    %16 = arith.addf %13, %15 : vector<16x96xf32>
    %17 = vector.extract_strided_slice %16 {offsets = [0, 0], sizes = [16, 32], strides = [1, 1]} : vector<16x96xf32> to vector<16x32xf32>
    %18 = vector.shape_cast %17 : vector<16x32xf32> to vector<2x8x32xf32>
    %19 = vector.extract_strided_slice %16 {offsets = [0, 32], sizes = [16, 32], strides = [1, 1]} : vector<16x96xf32> to vector<16x32xf32>
    %20 = vector.shape_cast %19 : vector<16x32xf32> to vector<2x8x32xf32>
    %21 = vector.extract_strided_slice %16 {offsets = [0, 64], sizes = [16, 32], strides = [1, 1]} : vector<16x96xf32> to vector<16x32xf32>
    %22 = vector.shape_cast %21 : vector<16x32xf32> to vector<2x8x32xf32>
    %cst_11 = arith.constant 0.176776692 : f32
    %23 = vector.broadcast %cst_11 : f32 to vector<2x8x32xf32>
    %24 = arith.mulf %18, %23 : vector<2x8x32xf32>
    %25 = arith.truncf %24 : vector<2x8x32xf32> to vector<2x8x32xbf16>
    %26 = arith.truncf %20 : vector<2x8x32xf32> to vector<2x8x32xbf16>
    "tpu.trace_start"() <{level = 10 : i32, message = "bqh,bkh->bqk"}> : () -> ()
    %cst_12 = arith.constant dense<0.000000e+00> : vector<2x8x8xf32>
    %27 = tpu.matmul %25, %26, %cst_12 {dimension_numbers = #tpu.dot_dimension_numbers<[2], [2], [1], [1], [0, 0, 0, 1, 1, 1], [0], [0]>} : vector<2x8x32xbf16>, vector<2x8x32xbf16>, vector<2x8x8xf32> -> vector<2x8x8xf32>
    "tpu.trace_stop"() : () -> ()
    %cst_13 = arith.constant dense<0xFF800000> : vector<2x8xf32>
    %28 = vector.multi_reduction <maximumf>, %27, %cst_13 [2] : vector<2x8x8xf32> to vector<2x8xf32>
    %29 = vector.shape_cast %28 : vector<2x8xf32> to vector<2x8x1xf32>
    %30 = vector.broadcast %29 : vector<2x8x1xf32> to vector<2x8x8xf32>
    %31 = arith.subf %27, %30 : vector<2x8x8xf32>
    %32 = math.exp %31 : vector<2x8x8xf32>
    %cst_14 = arith.constant dense<0.000000e+00> : vector<2x8xf32>
    %33 = vector.multi_reduction <add>, %32, %cst_14 [2] : vector<2x8x8xf32> to vector<2x8xf32>
    %34 = vector.shape_cast %33 : vector<2x8xf32> to vector<2x8x1xf32>
    %35 = tpu.reciprocal %34 {approx = true} : vector<2x8x1xf32> -> vector<2x8x1xf32>
    %36 = vector.broadcast %35 : vector<2x8x1xf32> to vector<2x8x8xf32>
    %37 = arith.mulf %32, %36 : vector<2x8x8xf32>
    %38 = arith.truncf %37 : vector<2x8x8xf32> to vector<2x8x8xbf16>
    %39 = arith.truncf %22 : vector<2x8x32xf32> to vector<2x8x32xbf16>
    "tpu.trace_start"() <{level = 10 : i32, message = "bqk,bkh->bqh"}> : () -> ()
    %cst_15 = arith.constant dense<0.000000e+00> : vector<2x8x32xf32>
    %40 = tpu.matmul %38, %39, %cst_15 {dimension_numbers = #tpu.dot_dimension_numbers<[2], [1], [1], [2], [0, 0, 0, 1, 1, 2], [0], [0]>} : vector<2x8x8xbf16>, vector<2x8x32xbf16>, vector<2x8x32xf32> -> vector<2x8x32xf32>
    "tpu.trace_stop"() : () -> ()
    %41 = vector.shape_cast %40 : vector<2x8x32xf32> to vector<16x32xf32>
    %42 = arith.truncf %41 : vector<16x32xf32> to vector<16x32xbf16>
    %c0_16 = arith.constant 0 : index
    %c0_17 = arith.constant 0 : index
    %43 = vector.load %arg6[%c0_16, %c0_17] : memref<32x32xbf16, #tpu.memory_space<vmem>>, vector<32x32xbf16>
    %cst_18 = arith.constant dense<0.000000e+00> : vector<16x32xf32>
    %44 = tpu.matmul %42, %43, %cst_18 {dimension_numbers = #tpu.dot_dimension_numbers<[1], [0], [0], [1], [0, 0, 1, 1], [], []>} : vector<16x32xbf16>, vector<32x32xbf16>, vector<16x32xf32> -> vector<16x32xf32>
    %c0_19 = arith.constant 0 : index
    %c0_20 = arith.constant 0 : index
    %45 = vector.load %arg7[%c0_19, %c0_20] : memref<1x32xf32, #tpu.memory_space<vmem>>, vector<1x32xf32>
    %46 = vector.broadcast %45 : vector<1x32xf32> to vector<16x32xf32>
    %47 = arith.addf %44, %46 : vector<16x32xf32>
    %48 = arith.truncf %47 : vector<16x32xf32> to vector<16x32xbf16>
    %c0_21 = arith.constant 0 : index
    %c0_22 = arith.constant 0 : index
    %49 = vector.load %arg8[%c0_21, %c0_22] : memref<32x32xbf16, #tpu.memory_space<vmem>>, vector<32x32xbf16>
    %cst_23 = arith.constant dense<0.000000e+00> : vector<16x32xf32>
    %50 = tpu.matmul %48, %49, %cst_23 {dimension_numbers = #tpu.dot_dimension_numbers<[1], [0], [0], [1], [0, 0, 1, 1], [], []>} : vector<16x32xbf16>, vector<32x32xbf16>, vector<16x32xf32> -> vector<16x32xf32>
    %c0_24 = arith.constant 0 : index
    %c0_25 = arith.constant 0 : index
    %51 = vector.load %arg9[%c0_24, %c0_25] : memref<1x32xf32, #tpu.memory_space<vmem>>, vector<1x32xf32>
    %52 = vector.broadcast %51 : vector<1x32xf32> to vector<16x32xf32>
    %53 = arith.addf %50, %52 : vector<16x32xf32>
    %cst_26 = arith.constant 0.000000e+00 : f32
    %54 = vector.broadcast %cst_26 : f32 to vector<16x32xf32>
    %55 = arith.maximumf %53, %54 : vector<16x32xf32>
    %56 = arith.truncf %55 : vector<16x32xf32> to vector<16x32xbf16>
    %c0_27 = arith.constant 0 : index
    %c0_28 = arith.constant 0 : index
    %57 = vector.load %arg10[%c0_27, %c0_28] : memref<32x128xbf16, #tpu.memory_space<vmem>>, vector<32x128xbf16>
    %cst_29 = arith.constant dense<0.000000e+00> : vector<16x128xf32>
    %58 = tpu.matmul %56, %57, %cst_29 {dimension_numbers = #tpu.dot_dimension_numbers<[1], [0], [0], [1], [0, 0, 1, 1], [], []>} : vector<16x32xbf16>, vector<32x128xbf16>, vector<16x128xf32> -> vector<16x128xf32>
    %c0_30 = arith.constant 0 : index
    %c0_31 = arith.constant 0 : index
    %59 = vector.load %arg11[%c0_30, %c0_31] : memref<1x128xf32, #tpu.memory_space<vmem>>, vector<1x128xf32>
    %60 = vector.broadcast %59 : vector<1x128xf32> to vector<16x128xf32>
    %61 = arith.addf %58, %60 : vector<16x128xf32>
    %62 = vector.shape_cast %61 : vector<16x128xf32> to vector<2x8x128xf32>
    %c0_32 = arith.constant 0 : index
    %c0_33 = arith.constant 0 : index
    %c0_34 = arith.constant 0 : index
    %63 = vector.load %arg12[%c0_32, %c0_33, %c0_34] : memref<2x8x128xf32, #tpu.memory_space<vmem>>, vector<2x8x128xf32>
    tpu.vector_store %arg12[%c0_32, %c0_33, %c0_34], %62 {strides = array<i32>} : memref<2x8x128xf32, #tpu.memory_space<vmem>>, vector<2x8x128xf32>,
    return
  }
  func.func @transform_0(%arg0: i32) -> (i32, i32, i32) {
    %c0_i32 = arith.constant 0 : i32
    %c0_i32_0 = arith.constant 0 : i32
    %c0_i32_1 = arith.constant 0 : i32
    return %arg0, %c0_i32, %c0_i32_0 : i32, i32, i32
  }
  func.func @transform_1(%arg0: i32) -> (i32, i32) {
    %c0_i32 = arith.constant 0 : i32
    %c0_i32_0 = arith.constant 0 : i32
    %c0_i32_1 = arith.constant 0 : i32
    return %c0_i32, %c0_i32_0 : i32, i32
  }
  func.func @transform_2(%arg0: i32) -> (i32, i32) {
    %c0_i32 = arith.constant 0 : i32
    %c0_i32_0 = arith.constant 0 : i32
    %c0_i32_1 = arith.constant 0 : i32
    return %c0_i32, %c0_i32_0 : i32, i32
  }
  func.func @transform_3(%arg0: i32) -> (i32, i32) {
    %c0_i32 = arith.constant 0 : i32
    %c0_i32_0 = arith.constant 0 : i32
    %c0_i32_1 = arith.constant 0 : i32
    return %c0_i32, %c0_i32_0 : i32, i32
  }
  func.func @transform_4(%arg0: i32) -> (i32, i32) {
    %c0_i32 = arith.constant 0 : i32
    %c0_i32_0 = arith.constant 0 : i32
    %c0_i32_1 = arith.constant 0 : i32
    return %c0_i32, %c0_i32_0 : i32, i32
  }
  func.func @transform_5(%arg0: i32) -> (i32, i32) {
    %c0_i32 = arith.constant 0 : i32
    %c0_i32_0 = arith.constant 0 : i32
    %c0_i32_1 = arith.constant 0 : i32
    return %c0_i32, %c0_i32_0 : i32, i32
  }
  func.func @transform_6(%arg0: i32) -> (i32, i32) {
    %c0_i32 = arith.constant 0 : i32
    %c0_i32_0 = arith.constant 0 : i32
    %c0_i32_1 = arith.constant 0 : i32
    return %c0_i32, %c0_i32_0 : i32, i32
  }
  func.func @transform_7(%arg0: i32) -> (i32, i32) {
    %c0_i32 = arith.constant 0 : i32
    %c0_i32_0 = arith.constant 0 : i32
    %c0_i32_1 = arith.constant 0 : i32
    return %c0_i32, %c0_i32_0 : i32, i32
  }
  func.func @transform_8(%arg0: i32) -> (i32, i32) {
    %c0_i32 = arith.constant 0 : i32
    %c0_i32_0 = arith.constant 0 : i32
    %c0_i32_1 = arith.constant 0 : i32
    return %c0_i32, %c0_i32_0 : i32, i32
  }
  func.func @transform_9(%arg0: i32) -> (i32, i32) {
    %c0_i32 = arith.constant 0 : i32
    %c0_i32_0 = arith.constant 0 : i32
    %c0_i32_1 = arith.constant 0 : i32
    return %c0_i32, %c0_i32_0 : i32, i32
  }
  func.func @transform_10(%arg0: i32) -> (i32, i32) {
    %c0_i32 = arith.constant 0 : i32
    %c0_i32_0 = arith.constant 0 : i32
    %c0_i32_1 = arith.constant 0 : i32
    return %c0_i32, %c0_i32_0 : i32, i32
  }
  func.func @transform_11(%arg0: i32) -> (i32, i32, i32) {
    %c0_i32 = arith.constant 0 : i32
    %c0_i32_0 = arith.constant 0 : i32
    %c0_i32_1 = arith.constant 0 : i32
    return %arg0, %c0_i32, %c0_i32_0 : i32, i32, i32
  }
}

</mosaic_0001>

<llo_original>
// kernel: tpu_custom_call.1
$region0: #{tpu_custom_call.1}
  #allocation0 [shape = 'u32[]', space=smem, size = 0x4, offset = 0x4, fixed_abs, tag = 'smem constant byte address 0x4 - core index']
  #allocation1 [shape = 'u32[144,128]{1,0:T(1,128)}', space=vmem, size = 0x12000, scoped, tag = 'internal scratch']
  %s0 = inlined_call_operand.hbm [shape: f32[2,8,16], index: 0, kind: input, shape index: {}]
  %s1 = inlined_call_operand.hbm [shape: f32[8,32], index: 1, kind: input, shape index: {}]
  %s2 = inlined_call_operand.hbm [shape: bf16[16,32], index: 2, kind: input, shape index: {}]
  %s3 = inlined_call_operand.hbm [shape: bf16[32,96], index: 3, kind: input, shape index: {}]
  %s4 = inlined_call_operand.vmem [shape: f32[1,96], index: 4, kind: input, shape index: {}]
  %s5 = inlined_call_operand.vmem [shape: bf16[32,32], index: 5, kind: input, shape index: {}]
  %s6 = inlined_call_operand.vmem [shape: f32[1,32], index: 6, kind: input, shape index: {}]
  %s7 = inlined_call_operand.hbm [shape: bf16[32,32], index: 7, kind: input, shape index: {}]
  %s8 = inlined_call_operand.hbm [shape: f32[1,32], index: 8, kind: input, shape index: {}]
  %s9 = inlined_call_operand.vmem [shape: bf16[32,128], index: 9, kind: input, shape index: {}]
  %s10 = inlined_call_operand.vmem [shape: f32[1,128], index: 10, kind: input, shape index: {}]
  %s11 = inlined_call_operand.hbm [shape: f32[2,8,128], index: 11, kind: output, shape index: {}]
  %s12 = sld [smem:[#allocation0]]
  $region78: #{tpu_custom_call.1} parent=0
    _
  %s14 = ssub.s32 1, %s12
  %s15 = scalar_select 0, %s14, %s12
  $region1: #{tpu_custom_call.1} parent=0
    #allocation2 [shape = 'u8[8192]{0}', space=vmem, size = 0x2000, scoped, tag = 'input window, operand 0, single buffered']
    #allocation3 [shape = 's32[1]{0}', space=sflag, size = 0x4, scoped, tag = 'scoped memory for tpu_custom_call.1']
    #allocation4 [shape = 's32[1]{0}', space=sflag, size = 0x4, scoped, tag = 'scoped memory for tpu_custom_call.1']
    #allocation5 [shape = 'u8[4096]{0}', space=vmem, size = 0x1000, scoped, tag = 'input window, operand 1, single buffered']
    #allocation6 [shape = 's32[1]{0}', space=sflag, size = 0x4, scoped, tag = 'scoped memory for tpu_custom_call.1']
    #allocation7 [shape = 'u8[4096]{0}', space=vmem, size = 0x1000, scoped, tag = 'input window, operand 2, single buffered']
    #allocation8 [shape = 'u8[8192]{0}', space=vmem, size = 0x2000, scoped, tag = 'input window, operand 3, single buffered']
    #allocation9 [shape = 's32[1]{0}', space=sflag, size = 0x4, scoped, tag = 'scoped memory for tpu_custom_call.1']
    #allocation10 [shape = 'u8[8192]{0}', space=vmem, size = 0x2000, scoped, tag = 'input window, operand 7, single buffered']
    #allocation11 [shape = 'u8[512]{0}', space=vmem, size = 0x400, scoped, tag = 'input window, operand 8, single buffered']
    #allocation12 [shape = 's32[1]{0}', space=sflag, size = 0x4, scoped, tag = 'scoped memory for tpu_custom_call.1']
    #allocation13 [shape = 'u8[8192]{0}', space=vmem, size = 0x2000, scoped, tag = 'output window, operand 0, single buffered']
    %16 = vsyncpa [#allocation3], 0
    %17 = vsyncpa [#allocation6], 0
    %18 = vsyncpa [#allocation9], 0
    %19 = vsyncpa [#allocation12], 0
    %20 = vsyncpa [#allocation4], 0
    // Predicated region
    $region2: #{tpu_custom_call.1} parent=1 // pred_check
      _
    $region3: #{tpu_custom_call.1} parent=1 // pred_check_branch
      %22 = sbr.rel (0) target = $region5
    $region4: #{tpu_custom_call.1} parent=1 // pred_region
      %s24 = ssub.s32 256, 256
      %25 = vsyncadd [#allocation3], %s24
      %s26 = sshll.u32 [#allocation2], 4
      %s27 = int_to_ptr.vmem [resolvable:$true] %s26
      %32 = dma.hbm_to_vmem [thread:$0]  %s0, 256, %s27, [#allocation3], 128, 128, 8
    $region5: #{tpu_custom_call.1} parent=1 // pred_fallthru
      _
    // Predicated region
    $region6: #{tpu_custom_call.1} parent=1 // pred_check
      _
    $region7: #{tpu_custom_call.1} parent=1 // pred_check_branch
      %34 = sbr.rel (0) target = $region9
    $region8: #{tpu_custom_call.1} parent=1 // pred_region
      %s36 = ssub.s32 128, 128
      %37 = vsyncadd [#allocation6], %s36
      %s39 = sshll.u32 [#allocation5], 4
      %s40 = int_to_ptr.vmem [resolvable:$true] %s39
      %42 = dma.hbm_to_vmem [thread:$0]  %s1, 128, %s40, [#allocation6]
    $region9: #{tpu_custom_call.1} parent=1 // pred_fallthru
      _
    // Predicated region
    $region10: #{tpu_custom_call.1} parent=1 // pred_check
      _
    $region11: #{tpu_custom_call.1} parent=1 // pred_check_branch
      %44 = sbr.rel (0) target = $region13
    $region12: #{tpu_custom_call.1} parent=1 // pred_region
      %s46 = ssub.s32 128, 128
      %47 = vsyncadd [#allocation6], %s46
      %s48 = sshll.u32 [#allocation7], 4
      %s49 = int_to_ptr.vmem [resolvable:$true] %s48
      %54 = dma.hbm_to_vmem [thread:$0]  %s2, 128, %s49, [#allocation6], 64, 64, 4
    $region13: #{tpu_custom_call.1} parent=1 // pred_fallthru
      _
    // Predicated region
    $region14: #{tpu_custom_call.1} parent=1 // pred_check
      _
    $region15: #{tpu_custom_call.1} parent=1 // pred_check_branch
      %56 = sbr.rel (0) target = $region17
    $region16: #{tpu_custom_call.1} parent=1 // pred_region
      %s58 = ssub.s32 256, 256
      %59 = vsyncadd [#allocation9], %s58
      %s60 = sshll.u32 [#allocation8], 4
      %s61 = int_to_ptr.vmem [resolvable:$true] %s60
      %66 = dma.hbm_to_vmem [thread:$0]  %s3, 256, %s61, [#allocation9], 64, 64, 4
    $region17: #{tpu_custom_call.1} parent=1 // pred_fallthru
      _
    // Predicated region
    $region18: #{tpu_custom_call.1} parent=1 // pred_check
      _
    $region19: #{tpu_custom_call.1} parent=1 // pred_check_branch
      %68 = sbr.rel (0) target = $region21
    $region20: #{tpu_custom_call.1} parent=1 // pred_region
      _
    $region21: #{tpu_custom_call.1} parent=1 // pred_fallthru
      _
    // Predicated region
    $region22: #{tpu_custom_call.1} parent=1 // pred_check
      _
    $region23: #{tpu_custom_call.1} parent=1 // pred_check_branch
      %70 = sbr.rel (0) target = $region25
    $region24: #{tpu_custom_call.1} parent=1 // pred_region
      _
    $region25: #{tpu_custom_call.1} parent=1 // pred_fallthru
      _
    // Predicated region
    $region26: #{tpu_custom_call.1} parent=1 // pred_check
      _
    $region27: #{tpu_custom_call.1} parent=1 // pred_check_branch
      %72 = sbr.rel (0) target = $region29
    $region28: #{tpu_custom_call.1} parent=1 // pred_region
      _
    $region29: #{tpu_custom_call.1} parent=1 // pred_fallthru
      _
    // Predicated region
    $region30: #{tpu_custom_call.1} parent=1 // pred_check
      _
    $region31: #{tpu_custom_call.1} parent=1 // pred_check_branch
      %74 = sbr.rel (0) target = $region33
    $region32: #{tpu_custom_call.1} parent=1 // pred_region
      %s76 = ssub.s32 256, 256
      %77 = vsyncadd [#allocation9], %s76
      %s78 = sshll.u32 [#allocation10], 4
      %s79 = int_to_ptr.vmem [resolvable:$true] %s78
      %84 = dma.hbm_to_vmem [thread:$0]  %s7, 256, %s79, [#allocation9], 64, 64, 4
    $region33: #{tpu_custom_call.1} parent=1 // pred_fallthru
      _
    // Predicated region
    $region34: #{tpu_custom_call.1} parent=1 // pred_check
      _
    $region35: #{tpu_custom_call.1} parent=1 // pred_check_branch
      %86 = sbr.rel (0) target = $region37
    $region36: #{tpu_custom_call.1} parent=1 // pred_region
      %s88 = ssub.s32 16, 16
      %89 = vsyncadd [#allocation12], %s88
      %s91 = sshll.u32 [#allocation11], 4
      %s92 = int_to_ptr.vmem [resolvable:$true] %s91
      %94 = dma.hbm_to_vmem [thread:$0]  %s8, 16, %s92, [#allocation12]
    $region37: #{tpu_custom_call.1} parent=1 // pred_fallthru
      _
    // Predicated region
    $region38: #{tpu_custom_call.1} parent=1 // pred_check
      _
    $region39: #{tpu_custom_call.1} parent=1 // pred_check_branch
      %96 = sbr.rel (0) target = $region41
    $region40: #{tpu_custom_call.1} parent=1 // pred_region
      _
    $region41: #{tpu_custom_call.1} parent=1 // pred_fallthru
      _
    // Predicated region
    $region42: #{tpu_custom_call.1} parent=1 // pred_check
      _
    $region43: #{tpu_custom_call.1} parent=1 // pred_check_branch
      %98 = sbr.rel (0) target = $region45
    $region44: #{tpu_custom_call.1} parent=1 // pred_region
      _
    $region45: #{tpu_custom_call.1} parent=1 // pred_fallthru
      _
    // Predicated region
    $region46: #{tpu_custom_call.1} parent=1 // pred_check
      _
    $region47: #{tpu_custom_call.1} parent=1 // pred_check_branch
      %100 = sbr.rel (0) target = $region49
    $region48: #{tpu_custom_call.1} parent=1 // pred_region
      %101 = dma.done [#allocation3], 256
    $region49: #{tpu_custom_call.1} parent=1 // pred_fallthru
      _
    // Predicated region
    $region50: #{tpu_custom_call.1} parent=1 // pred_check
      _
    $region51: #{tpu_custom_call.1} parent=1 // pred_check_branch
      %103 = sbr.rel (0) target = $region53
    $region52: #{tpu_custom_call.1} parent=1 // pred_region
      %104 = dma.done [#allocation6], 128
    $region53: #{tpu_custom_call.1} parent=1 // pred_fallthru
      _
    // Predicated region
    $region54: #{tpu_custom_call.1} parent=1 // pred_check
      _
    $region55: #{tpu_custom_call.1} parent=1 // pred_check_branch
      %106 = sbr.rel (0) target = $region57
    $region56: #{tpu_custom_call.1} parent=1 // pred_region
      %107 = dma.done [#allocation6], 128
    $region57: #{tpu_custom_call.1} parent=1 // pred_fallthru
      _
    // Predicated region
    $region58: #{tpu_custom_call.1} parent=1 // pred_check
      _
    $region59: #{tpu_custom_call.1} parent=1 // pred_check_branch
      %109 = sbr.rel (0) target = $region61
    $region60: #{tpu_custom_call.1} parent=1 // pred_region
      %110 = dma.done [#allocation9], 256
    $region61: #{tpu_custom_call.1} parent=1 // pred_fallthru
      _
    // Predicated region
    $region62: #{tpu_custom_call.1} parent=1 // pred_check
      _
    $region63: #{tpu_custom_call.1} parent=1 // pred_check_branch
      %112 = sbr.rel (0) target = $region65
    $region64: #{tpu_custom_call.1} parent=1 // pred_region
      %113 = dma.done [#allocation9], 256
    $region65: #{tpu_custom_call.1} parent=1 // pred_fallthru
      _
    // Predicated region
    $region66: #{tpu_custom_call.1} parent=1 // pred_check
      _
    $region67: #{tpu_custom_call.1} parent=1 // pred_check_branch
      %115 = sbr.rel (0) target = $region69
    $region68: #{tpu_custom_call.1} parent=1 // pred_region
      %116 = dma.done [#allocation12], 16
    $region69: #{tpu_custom_call.1} parent=1 // pred_fallthru
      _
    %v118 = vld [vmem:[#allocation2] sm:$0xff]
    %v119 = vld [vmem:[#allocation2 + $0x8] sm:$0xff]
    %v120 = vpack.c.bf16 %v119, %v118
    %v121 = vld [vmem:[#allocation7] sm:$0xf]
    %v122 = vld [vmem:[#allocation7 + $0x4] sm:$0xf]
    %v125 = vunpack.c.l.b16 %v121
    %v126 = vunpack.c.l.b16 %v122
    %v127 = vpack.c.b16 %v126, %v125
    %vm129 = vcmask 130048
    %v131 = vsel %vm129, %v120, 0
    %133 = vmatprep.subr.bf16.mxu0 0
    %134 = vmatpush1.bf16.msra.mxu0 %v127
    %135 = vmatprep.subr.bf16.mxu0 0
    %136 = vmatpush1.bf16.msra.mxu0 0
    %137 = vmatprep.subr.bf16.mxu0 0
    %138 = vmatpush1.bf16.msra.mxu0 0
    %139 = vmatprep.subr.bf16.mxu0 0
    %140 = vmatpush1.bf16.msra.mxu0 0
    %141 = vmatprep.subr.bf16.mxu0 0
    %142 = vmatpush1.bf16.msra.mxu0 0
    %143 = vmatprep.subr.bf16.mxu0 0
    %144 = vmatpush1.bf16.msra.mxu0 0
    %145 = vmatprep.subr.bf16.mxu0 0
    %146 = vmatpush1.bf16.msra.mxu0 0
    %147 = vmatprep.subr.bf16.mxu0 0
    %148 = vmatpush1.bf16.msra.mxu0 0
    %149 = vmatprep.subr.bf16.mxu0 0
    %150 = vmatpush1.bf16.msra.mxu0 0
    %151 = vmatprep.subr.bf16.mxu0 0
    %152 = vmatpush1.bf16.msra.mxu0 0
    %153 = vmatprep.subr.bf16.mxu0 0
    %154 = vmatpush1.bf16.msra.mxu0 0
    %155 = vmatprep.subr.bf16.mxu0 0
    %156 = vmatpush1.bf16.msra.mxu0 0
    %157 = vmatprep.subr.bf16.mxu0 0
    %158 = vmatpush1.bf16.msra.mxu0 0
    %159 = vmatprep.subr.bf16.mxu0 0
    %160 = vmatpush1.bf16.msra.mxu0 0
    %161 = vmatprep.subr.bf16.mxu0 0
    %162 = vmatpush1.bf16.msra.mxu0 0
    %163 = vmatprep.subr.bf16.mxu0 0
    %164 = vmatpush1.bf16.msra.mxu0 0
    %165 = vmatprep.mubr.bf16.mxu0 0
    %166 = vmatmul.mubr.bf16.gmra.mrb[0].mxu0 %v131
    %v167 = vpop.f32.mrb[0].mxu0
    %v168 = vadd.f32 0.0, %v167
    %v169 = vpop.f32.mrb[0].mxu0
    %v170 = vpop.f32.mrb[0].mxu0
    %v171 = vadd.f32 0.0, %v170
    %v172 = vpop.f32.mrb[0].mxu0
    %173 = vdwg.mxu0
    %v174 = vld [vmem:[#allocation5] sm:$0xff]
    %v175 = vadd.f32 %v168, %v174
    %v176 = vadd.f32 %v171, %v174
    %v177 = vpack.c.bf16 %v176, %v175
    %v178 = vld [vmem:[#allocation8] sm:$0xf]
    %v179 = vld [vmem:[#allocation8 + $0x4] sm:$0xf]
    %v180 = vld [vmem:[#allocation8 + $0x8] sm:$0xf]
    %v181 = vld [vmem:[#allocation8 + $0xc] sm:$0xf]
    %v182 = vld [vmem:[%s4] sm:$0x1]
    %v184 = vlaneseq
    %v185 = vshrl.u32 %v184, 7
    %v186 = vsub.s32 0, %v185
    %v187 = vrot.slane %v182, %v186
    %v193 = vunpack.c.l.b16 %v178
    %v194 = vunpack.c.l.b16 %v179
    %v195 = vunpack.c.l.b16 %v180
    %v196 = vunpack.c.l.b16 %v181
    %v197 = vpack.c.b16 %v194, %v193
    %v198 = vpack.c.b16 %v196, %v195
    %vm201 = vcmask 261120
    %v203 = vsel %vm201, %v177, 0
    %205 = vmatprep.subr.bf16.mxu0 0
    %206 = vmatpush1.bf16.msra.mxu0 %v197
    %207 = vmatprep.subr.bf16.mxu0 0
    %208 = vmatpush1.bf16.msra.mxu0 %v198
    %209 = vmatprep.subr.bf16.mxu0 0
    %210 = vmatpush1.bf16.msra.mxu0 0
    %211 = vmatprep.subr.bf16.mxu0 0
    %212 = vmatpush1.bf16.msra.mxu0 0
    %213 = vmatprep.subr.bf16.mxu0 0
    %214 = vmatpush1.bf16.msra.mxu0 0
    %215 = vmatprep.subr.bf16.mxu0 0
    %216 = vmatpush1.bf16.msra.mxu0 0
    %217 = vmatprep.subr.bf16.mxu0 0
    %218 = vmatpush1.bf16.msra.mxu0 0
    %219 = vmatprep.subr.bf16.mxu0 0
    %220 = vmatpush1.bf16.msra.mxu0 0
    %221 = vmatprep.subr.bf16.mxu0 0
    %222 = vmatpush1.bf16.msra.mxu0 0
    %223 = vmatprep.subr.bf16.mxu0 0
    %224 = vmatpush1.bf16.msra.mxu0 0
    %225 = vmatprep.subr.bf16.mxu0 0
    %226 = vmatpush1.bf16.msra.mxu0 0
    %227 = vmatprep.subr.bf16.mxu0 0
    %228 = vmatpush1.bf16.msra.mxu0 0
    %229 = vmatprep.subr.bf16.mxu0 0
    %230 = vmatpush1.bf16.msra.mxu0 0
    %231 = vmatprep.subr.bf16.mxu0 0
    %232 = vmatpush1.bf16.msra.mxu0 0
    %233 = vmatprep.subr.bf16.mxu0 0
    %234 = vmatpush1.bf16.msra.mxu0 0
    %235 = vmatprep.subr.bf16.mxu0 0
    %236 = vmatpush1.bf16.msra.mxu0 0
    %237 = vmatprep.mubr.bf16.mxu0 0
    %238 = vmatmul.mubr.bf16.gmra.mrb[0].mxu0 %v203
    %v239 = vpop.f32.mrb[0].mxu0
    %v240 = vadd.f32 %v187, %v239
    %v241 = vpop.f32.mrb[0].mxu0
    %v242 = vpop.f32.mrb[0].mxu0
    %v243 = vadd.f32 %v187, %v242
    %v244 = vpop.f32.mrb[0].mxu0
    %245 = vdwg.mxu0
    %v246 = vmul.f32 %v240, 0.17677669
    %v247 = vmul.f32 %v243, 0.17677669
    %v248 = vpack.c.bf16 %v246, %v246
    %v249 = vpack.c.bf16 %v247, %v247
    %v250 = vpack.c.bf16 %v240, %v240
    %v251 = vpack.c.bf16 %v243, %v243
    %253 = vrot.lane.b32.xlu0 %v250, 96
    %v254 = vpop.permute.xlu0 %253
    %v256 = vsel %vm201, %v248, 0
    %v259 = vsel %vm201, %v254, 0
    %261 = vmatprep.subr.bf16.mxu0 0
    %262 = vmatpush1.bf16.xpose.msra.mxu0 %v259
    %263 = vmatprep.subr.bf16.mxu0 0
    %264 = vmatpush1.bf16.xpose.msra.mxu0 0
    %265 = vmatprep.subr.bf16.mxu0 0
    %266 = vmatpush1.bf16.xpose.msra.mxu0 0
    %267 = vmatprep.subr.bf16.mxu0 0
    %268 = vmatpush1.bf16.xpose.msra.mxu0 0
    %269 = vmatprep.subr.bf16.mxu0 0
    %270 = vmatpush1.bf16.xpose.msra.mxu0 0
    %271 = vmatprep.subr.bf16.mxu0 0
    %272 = vmatpush1.bf16.xpose.msra.mxu0 0
    %273 = vmatprep.subr.bf16.mxu0 0
    %274 = vmatpush1.bf16.xpose.msra.mxu0 0
    %275 = vmatprep.subr.bf16.mxu0 0
    %276 = vmatpush1.bf16.xpose.msra.mxu0 0
    %277 = vmatprep.subr.bf16.mxu0 0
    %278 = vmatpush1.bf16.xpose.msra.mxu0 0
    %279 = vmatprep.subr.bf16.mxu0 0
    %280 = vmatpush1.bf16.xpose.msra.mxu0 0
    %281 = vmatprep.subr.bf16.mxu0 0
    %282 = vmatpush1.bf16.xpose.msra.mxu0 0
    %283 = vmatprep.subr.bf16.mxu0 0
    %284 = vmatpush1.bf16.xpose.msra.mxu0 0
    %285 = vmatprep.subr.bf16.mxu0 0
    %286 = vmatpush1.bf16.xpose.msra.mxu0 0
    %287 = vmatprep.subr.bf16.mxu0 0
    %288 = vmatpush1.bf16.xpose.msra.mxu0 0
    %289 = vmatprep.subr.bf16.mxu0 0
    %290 = vmatpush1.bf16.xpose.msra.mxu0 0
    %291 = vmatprep.subr.bf16.mxu0 0
    %292 = vmatpush1.bf16.xpose.msra.mxu0 0
    %293 = vmatprep.mubr.bf16.mxu0 0
    %294 = vmatmul.mubr.bf16.gmra.mrb[0].mxu0 %v256
    %v295 = vpop.f32.mrb[0].mxu0
    %v296 = vadd.f32 0.0, %v295
    %v297 = vpop.f32.mrb[0].mxu0
    %v298 = vpop.f32.mrb[0].mxu0
    %v299 = vpop.f32.mrb[0].mxu0
    %300 = vdwg.mxu0
    %302 = vrot.lane.b32.xlu0 %v251, 96
    %v303 = vpop.permute.xlu0 %302
    %v305 = vsel %vm201, %v249, 0
    %v308 = vsel %vm201, %v303, 0
    %310 = vmatprep.subr.bf16.mxu0 0
    %311 = vmatpush1.bf16.xpose.msra.mxu0 %v308
    %312 = vmatprep.subr.bf16.mxu0 0
    %313 = vmatpush1.bf16.xpose.msra.mxu0 0
    %314 = vmatprep.subr.bf16.mxu0 0
    %315 = vmatpush1.bf16.xpose.msra.mxu0 0
    %316 = vmatprep.subr.bf16.mxu0 0
    %317 = vmatpush1.bf16.xpose.msra.mxu0 0
    %318 = vmatprep.subr.bf16.mxu0 0
    %319 = vmatpush1.bf16.xpose.msra.mxu0 0
    %320 = vmatprep.subr.bf16.mxu0 0
    %321 = vmatpush1.bf16.xpose.msra.mxu0 0
    %322 = vmatprep.subr.bf16.mxu0 0
    %323 = vmatpush1.bf16.xpose.msra.mxu0 0
    %324 = vmatprep.subr.bf16.mxu0 0
    %325 = vmatpush1.bf16.xpose.msra.mxu0 0
    %326 = vmatprep.subr.bf16.mxu0 0
    %327 = vmatpush1.bf16.xpose.msra.mxu0 0
    %328 = vmatprep.subr.bf16.mxu0 0
    %329 = vmatpush1.bf16.xpose.msra.mxu0 0
    %330 = vmatprep.subr.bf16.mxu0 0
    %331 = vmatpush1.bf16.xpose.msra.mxu0 0
    %332 = vmatprep.subr.bf16.mxu0 0
    %333 = vmatpush1.bf16.xpose.msra.mxu0 0
    %334 = vmatprep.subr.bf16.mxu0 0
    %335 = vmatpush1.bf16.xpose.msra.mxu0 0
    %336 = vmatprep.subr.bf16.mxu0 0
    %337 = vmatpush1.bf16.xpose.msra.mxu0 0
    %338 = vmatprep.subr.bf16.mxu0 0
    %339 = vmatpush1.bf16.xpose.msra.mxu0 0
    %340 = vmatprep.subr.bf16.mxu0 0
    %341 = vmatpush1.bf16.xpose.msra.mxu0 0
    %342 = vmatprep.mubr.bf16.mxu0 0
    %343 = vmatmul.mubr.bf16.gmra.mrb[0].mxu0 %v305
    %v344 = vpop.f32.mrb[0].mxu0
    %v345 = vadd.f32 0.0, %v344
    %v346 = vpop.f32.mrb[0].mxu0
    %v347 = vpop.f32.mrb[0].mxu0
    %v348 = vpop.f32.mrb[0].mxu0
    %349 = vdwg.mxu0
    %vm350 = vcmask 64512
    %v351 = vsel %vm350, %v296, -inf
    %352 = vmax.xlane.f32.xlu0 %v351
    %v353 = vpop.xlane.xlu0 %352
    %v354 = vsel %vm350, %v345, -inf
    %355 = vmax.xlane.f32.xlu0 %v354
    %v356 = vpop.xlane.xlu0 %355
    %v357 = vsub.f32 %v296, %v353
    %v358 = vsub.f32 %v345, %v356
    %v359 = vmul.f32 %v357, 1.442695
    %v360 = vpow.pop %v359
    %v361 = vmul.f32 %v358, 1.442695
    %v362 = vpow.pop %v361
    %v363 = vsel %vm350, %v360, 0.0
    %364 = vadd.xlane.f32.xlu0 %v363
    %v365 = vpop.xlane.xlu0 %364
    %v366 = vsel %vm350, %v362, 0.0
    %367 = vadd.xlane.f32.xlu0 %v366
    %v368 = vpop.xlane.xlu0 %367
    %v369 = vrcp.pop %v365
    %v370 = vrcp.pop %v368
    %v371 = vmul.f32 %v360, %v369
    %v372 = vmul.f32 %v362, %v370
    %v373 = vpack.c.bf16 %v371, %v371
    %v374 = vpack.c.bf16 %v372, %v372
    %375 = vrot.lane.b32.xlu0 %v250, 64
    %v376 = vpop.permute.xlu0 %375
    %v378 = vsel %vm350, %v373, 0
    %vm380 = vcmask 1043456
    %v382 = vsel %vm380, %v376, 0
    %384 = vmatprep.subr.bf16.mxu0 0
    %385 = vmatpush1.bf16.msra.mxu0 %v382
    %386 = vmatprep.subr.bf16.mxu0 0
    %387 = vmatpush1.bf16.msra.mxu0 0
    %388 = vmatprep.subr.bf16.mxu0 0
    %389 = vmatpush1.bf16.msra.mxu0 0
    %390 = vmatprep.subr.bf16.mxu0 0
    %391 = vmatpush1.bf16.msra.mxu0 0
    %392 = vmatprep.subr.bf16.mxu0 0
    %393 = vmatpush1.bf16.msra.mxu0 0
    %394 = vmatprep.subr.bf16.mxu0 0
    %395 = vmatpush1.bf16.msra.mxu0 0
    %396 = vmatprep.subr.bf16.mxu0 0
    %397 = vmatpush1.bf16.msra.mxu0 0
    %398 = vmatprep.subr.bf16.mxu0 0
    %399 = vmatpush1.bf16.msra.mxu0 0
    %400 = vmatprep.subr.bf16.mxu0 0
    %401 = vmatpush1.bf16.msra.mxu0 0
    %402 = vmatprep.subr.bf16.mxu0 0
    %403 = vmatpush1.bf16.msra.mxu0 0
    %404 = vmatprep.subr.bf16.mxu0 0
    %405 = vmatpush1.bf16.msra.mxu0 0
    %406 = vmatprep.subr.bf16.mxu0 0
    %407 = vmatpush1.bf16.msra.mxu0 0
    %408 = vmatprep.subr.bf16.mxu0 0
    %409 = vmatpush1.bf16.msra.mxu0 0
    %410 = vmatprep.subr.bf16.mxu0 0
    %411 = vmatpush1.bf16.msra.mxu0 0
    %412 = vmatprep.subr.bf16.mxu0 0
    %413 = vmatpush1.bf16.msra.mxu0 0
    %414 = vmatprep.subr.bf16.mxu0 0
    %415 = vmatpush1.bf16.msra.mxu0 0
    %416 = vmatprep.mubr.bf16.mxu0 0
    %417 = vmatmul.mubr.bf16.gmra.mrb[0].mxu0 %v378
    %v418 = vpop.f32.mrb[0].mxu0
    %v419 = vadd.f32 0.0, %v418
    %v420 = vpop.f32.mrb[0].mxu0
    %v421 = vpop.f32.mrb[0].mxu0
    %v422 = vpop.f32.mrb[0].mxu0
    %423 = vdwg.mxu0
    %424 = vrot.lane.b32.xlu0 %v251, 64
    %v425 = vpop.permute.xlu0 %424
    %v427 = vsel %vm350, %v374, 0
    %v430 = vsel %vm380, %v425, 0
    %432 = vmatprep.subr.bf16.mxu0 0
    %433 = vmatpush1.bf16.msra.mxu0 %v430
    %434 = vmatprep.subr.bf16.mxu0 0
    %435 = vmatpush1.bf16.msra.mxu0 0
    %436 = vmatprep.subr.bf16.mxu0 0
    %437 = vmatpush1.bf16.msra.mxu0 0
    %438 = vmatprep.subr.bf16.mxu0 0
    %439 = vmatpush1.bf16.msra.mxu0 0
    %440 = vmatprep.subr.bf16.mxu0 0
    %441 = vmatpush1.bf16.msra.mxu0 0
    %442 = vmatprep.subr.bf16.mxu0 0
    %443 = vmatpush1.bf16.msra.mxu0 0
    %444 = vmatprep.subr.bf16.mxu0 0
    %445 = vmatpush1.bf16.msra.mxu0 0
    %446 = vmatprep.subr.bf16.mxu0 0
    %447 = vmatpush1.bf16.msra.mxu0 0
    %448 = vmatprep.subr.bf16.mxu0 0
    %449 = vmatpush1.bf16.msra.mxu0 0
    %450 = vmatprep.subr.bf16.mxu0 0
    %451 = vmatpush1.bf16.msra.mxu0 0
    %452 = vmatprep.subr.bf16.mxu0 0
    %453 = vmatpush1.bf16.msra.mxu0 0
    %454 = vmatprep.subr.bf16.mxu0 0
    %455 = vmatpush1.bf16.msra.mxu0 0
    %456 = vmatprep.subr.bf16.mxu0 0
    %457 = vmatpush1.bf16.msra.mxu0 0
    %458 = vmatprep.subr.bf16.mxu0 0
    %459 = vmatpush1.bf16.msra.mxu0 0
    %460 = vmatprep.subr.bf16.mxu0 0
    %461 = vmatpush1.bf16.msra.mxu0 0
    %462 = vmatprep.subr.bf16.mxu0 0
    %463 = vmatpush1.bf16.msra.mxu0 0
    %464 = vmatprep.mubr.bf16.mxu0 0
    %465 = vmatmul.mubr.bf16.gmra.mrb[0].mxu0 %v427
    %v466 = vpop.f32.mrb[0].mxu0
    %v467 = vadd.f32 0.0, %v466
    %v468 = vpop.f32.mrb[0].mxu0
    %v469 = vpop.f32.mrb[0].mxu0
    %v470 = vpop.f32.mrb[0].mxu0
    %471 = vdwg.mxu0
    %v472 = vpack.c.bf16 %v467, %v419
    %v473 = vld [vmem:[%s5] sm:$0xf]
    %v474 = vld [vmem:[%s5 + $0x4] sm:$0xf]
    %v475 = vld [vmem:[%s5 + $0x8] sm:$0xf]
    %v476 = vld [vmem:[%s5 + $0xc] sm:$0xf]
    %v477 = vld [vmem:[%s6] sm:$0x1]
    %v479 = vlaneseq
    %v480 = vshrl.u32 %v479, 7
    %v481 = vsub.s32 0, %v480
    %v482 = vrot.slane %v477, %v481
    %v488 = vunpack.c.l.b16 %v473
    %v489 = vunpack.c.l.b16 %v474
    %v490 = vunpack.c.l.b16 %v475
    %v491 = vunpack.c.l.b16 %v476
    %v492 = vpack.c.b16 %v489, %v488
    %v493 = vpack.c.b16 %v491, %v490
    %v497 = vsel %vm201, %v472, 0
    %499 = vmatprep.subr.bf16.mxu0 0
    %500 = vmatpush1.bf16.msra.mxu0 %v492
    %501 = vmatprep.subr.bf16.mxu0 0
    %502 = vmatpush1.bf16.msra.mxu0 %v493
    %503 = vmatprep.subr.bf16.mxu0 0
    %504 = vmatpush1.bf16.msra.mxu0 0
    %505 = vmatprep.subr.bf16.mxu0 0
    %506 = vmatpush1.bf16.msra.mxu0 0
    %507 = vmatprep.subr.bf16.mxu0 0
    %508 = vmatpush1.bf16.msra.mxu0 0
    %509 = vmatprep.subr.bf16.mxu0 0
    %510 = vmatpush1.bf16.msra.mxu0 0
    %511 = vmatprep.subr.bf16.mxu0 0
    %512 = vmatpush1.bf16.msra.mxu0 0
    %513 = vmatprep.subr.bf16.mxu0 0
    %514 = vmatpush1.bf16.msra.mxu0 0
    %515 = vmatprep.subr.bf16.mxu0 0
    %516 = vmatpush1.bf16.msra.mxu0 0
    %517 = vmatprep.subr.bf16.mxu0 0
    %518 = vmatpush1.bf16.msra.mxu0 0
    %519 = vmatprep.subr.bf16.mxu0 0
    %520 = vmatpush1.bf16.msra.mxu0 0
    %521 = vmatprep.subr.bf16.mxu0 0
    %522 = vmatpush1.bf16.msra.mxu0 0
    %523 = vmatprep.subr.bf16.mxu0 0
    %524 = vmatpush1.bf16.msra.mxu0 0
    %525 = vmatprep.subr.bf16.mxu0 0
    %526 = vmatpush1.bf16.msra.mxu0 0
    %527 = vmatprep.subr.bf16.mxu0 0
    %528 = vmatpush1.bf16.msra.mxu0 0
    %529 = vmatprep.subr.bf16.mxu0 0
    %530 = vmatpush1.bf16.msra.mxu0 0
    %531 = vmatprep.mubr.bf16.mxu0 0
    %532 = vmatmul.mubr.bf16.gmra.mrb[0].mxu0 %v497
    %v533 = vpop.f32.mrb[0].mxu0
    %v534 = vadd.f32 %v482, %v533
    %v535 = vpop.f32.mrb[0].mxu0
    %v536 = vpop.f32.mrb[0].mxu0
    %v537 = vadd.f32 %v482, %v536
    %v538 = vpop.f32.mrb[0].mxu0
    %539 = vdwg.mxu0
    %v540 = vpack.c.bf16 %v537, %v534
    %v541 = vld [vmem:[#allocation10] sm:$0xf]
    %v542 = vld [vmem:[#allocation10 + $0x4] sm:$0xf]
    %v543 = vld [vmem:[#allocation10 + $0x8] sm:$0xf]
    %v544 = vld [vmem:[#allocation10 + $0xc] sm:$0xf]
    %v545 = vld [vmem:[#allocation11] sm:$0x1]
    %v547 = vlaneseq
    %v548 = vshrl.u32 %v547, 7
    %v549 = vsub.s32 0, %v548
    %v550 = vrot.slane %v545, %v549
    %v556 = vunpack.c.l.b16 %v541
    %v557 = vunpack.c.l.b16 %v542
    %v558 = vunpack.c.l.b16 %v543
    %v559 = vunpack.c.l.b16 %v544
    %v560 = vpack.c.b16 %v557, %v556
    %v561 = vpack.c.b16 %v559, %v558
    %v565 = vsel %vm201, %v540, 0
    %567 = vmatprep.subr.bf16.mxu0 0
    %568 = vmatpush1.bf16.msra.mxu0 %v560
    %569 = vmatprep.subr.bf16.mxu0 0
    %570 = vmatpush1.bf16.msra.mxu0 %v561
    %571 = vmatprep.subr.bf16.mxu0 0
    %572 = vmatpush1.bf16.msra.mxu0 0
    %573 = vmatprep.subr.bf16.mxu0 0
    %574 = vmatpush1.bf16.msra.mxu0 0
    %575 = vmatprep.subr.bf16.mxu0 0
    %576 = vmatpush1.bf16.msra.mxu0 0
    %577 = vmatprep.subr.bf16.mxu0 0
    %578 = vmatpush1.bf16.msra.mxu0 0
    %579 = vmatprep.subr.bf16.mxu0 0
    %580 = vmatpush1.bf16.msra.mxu0 0
    %581 = vmatprep.subr.bf16.mxu0 0
    %582 = vmatpush1.bf16.msra.mxu0 0
    %583 = vmatprep.subr.bf16.mxu0 0
    %584 = vmatpush1.bf16.msra.mxu0 0
    %585 = vmatprep.subr.bf16.mxu0 0
    %586 = vmatpush1.bf16.msra.mxu0 0
    %587 = vmatprep.subr.bf16.mxu0 0
    %588 = vmatpush1.bf16.msra.mxu0 0
    %589 = vmatprep.subr.bf16.mxu0 0
    %590 = vmatpush1.bf16.msra.mxu0 0
    %591 = vmatprep.subr.bf16.mxu0 0
    %592 = vmatpush1.bf16.msra.mxu0 0
    %593 = vmatprep.subr.bf16.mxu0 0
    %594 = vmatpush1.bf16.msra.mxu0 0
    %595 = vmatprep.subr.bf16.mxu0 0
    %596 = vmatpush1.bf16.msra.mxu0 0
    %597 = vmatprep.subr.bf16.mxu0 0
    %598 = vmatpush1.bf16.msra.mxu0 0
    %599 = vmatprep.mubr.bf16.mxu0 0
    %600 = vmatmul.mubr.bf16.gmra.mrb[0].mxu0 %v565
    %v601 = vpop.f32.mrb[0].mxu0
    %v602 = vadd.f32 %v550, %v601
    %v603 = vpop.f32.mrb[0].mxu0
    %v604 = vpop.f32.mrb[0].mxu0
    %v605 = vadd.f32 %v550, %v604
    %v606 = vpop.f32.mrb[0].mxu0
    %607 = vdwg.mxu0
    %v608 = vmax.f32 %v602, 0.0
    %v609 = vmax.f32 %v605, 0.0
    %v610 = vpack.c.bf16 %v609, %v608
    %v611 = vld [vmem:[%s9] sm:$0xf]
    %v612 = vld [vmem:[%s9 + $0x4] sm:$0xf]
    %v613 = vld [vmem:[%s9 + $0x8] sm:$0xf]
    %v614 = vld [vmem:[%s9 + $0xc] sm:$0xf]
    %v615 = vld [vmem:[%s10] sm:$0x1]
    %v617 = vlaneseq
    %v618 = vshrl.u32 %v617, 7
    %v619 = vsub.s32 0, %v618
    %v620 = vrot.slane %v615, %v619
    %v626 = vunpack.c.l.b16 %v611
    %v627 = vunpack.c.l.b16 %v612
    %v628 = vunpack.c.l.b16 %v613
    %v629 = vunpack.c.l.b16 %v614
    %v630 = vpack.c.b16 %v627, %v626
    %v631 = vpack.c.b16 %v629, %v628
    %v635 = vsel %vm201, %v610, 0
    %637 = vmatprep.subr.bf16.mxu0 0
    %638 = vmatpush1.bf16.msra.mxu0 %v630
    %639 = vmatprep.subr.bf16.mxu0 0
    %640 = vmatpush1.bf16.msra.mxu0 %v631
    %641 = vmatprep.subr.bf16.mxu0 0
    %642 = vmatpush1.bf16.msra.mxu0 0
    %643 = vmatprep.subr.bf16.mxu0 0
    %644 = vmatpush1.bf16.msra.mxu0 0
    %645 = vmatprep.subr.bf16.mxu0 0
    %646 = vmatpush1.bf16.msra.mxu0 0
    %647 = vmatprep.subr.bf16.mxu0 0
    %648 = vmatpush1.bf16.msra.mxu0 0
    %649 = vmatprep.subr.bf16.mxu0 0
    %650 = vmatpush1.bf16.msra.mxu0 0
    %651 = vmatprep.subr.bf16.mxu0 0
    %652 = vmatpush1.bf16.msra.mxu0 0
    %653 = vmatprep.subr.bf16.mxu0 0
    %654 = vmatpush1.bf16.msra.mxu0 0
    %655 = vmatprep.subr.bf16.mxu0 0
    %656 = vmatpush1.bf16.msra.mxu0 0
    %657 = vmatprep.subr.bf16.mxu0 0
    %658 = vmatpush1.bf16.msra.mxu0 0
    %659 = vmatprep.subr.bf16.mxu0 0
    %660 = vmatpush1.bf16.msra.mxu0 0
    %661 = vmatprep.subr.bf16.mxu0 0
    %662 = vmatpush1.bf16.msra.mxu0 0
    %663 = vmatprep.subr.bf16.mxu0 0
    %664 = vmatpush1.bf16.msra.mxu0 0
    %665 = vmatprep.subr.bf16.mxu0 0
    %666 = vmatpush1.bf16.msra.mxu0 0
    %667 = vmatprep.subr.bf16.mxu0 0
    %668 = vmatpush1.bf16.msra.mxu0 0
    %669 = vmatprep.mubr.bf16.mxu0 0
    %670 = vmatmul.mubr.bf16.gmra.mrb[0].mxu0 %v635
    %v671 = vpop.f32.mrb[0].mxu0
    %v672 = vadd.f32 %v620, %v671
    %v673 = vpop.f32.mrb[0].mxu0
    %v674 = vpop.f32.mrb[0].mxu0
    %v675 = vadd.f32 %v620, %v674
    %v676 = vpop.f32.mrb[0].mxu0
    %677 = vdwg.mxu0
    %678 = vst [vmem:[#allocation13] sm:$0xff] %v672
    %679 = vst [vmem:[#allocation13 + $0x8] sm:$0xff] %v675
    // Predicated region
    $region70: #{tpu_custom_call.1} parent=1 // pred_check
      _
    $region71: #{tpu_custom_call.1} parent=1 // pred_check_branch
      %681 = sbr.rel (0) target = $region73
    $region72: #{tpu_custom_call.1} parent=1 // pred_region
      %s683 = ssub.s32 256, 256
      %684 = vsyncadd [#allocation4], %s683
      %s685 = sshll.u32 [#allocation13], 4
      %s686 = int_to_ptr.vmem [resolvable:$true] %s685
      %691 = dma.vmem_to_hbm [thread:$0]  %s686, 256, %s11, [#allocation4], 128, 128, 8
    $region73: #{tpu_custom_call.1} parent=1 // pred_fallthru
      _
    // Predicated region
    $region74: #{tpu_custom_call.1} parent=1 // pred_check
      _
    $region75: #{tpu_custom_call.1} parent=1 // pred_check_branch
      %693 = sbr.rel (0) target = $region77
    $region76: #{tpu_custom_call.1} parent=1 // pred_region
      %694 = dma.done [#allocation4], 256
    $region77: #{tpu_custom_call.1} parent=1 // pred_fallthru
      _
    %695 = vsyncpa [#allocation3], 1
    %696 = vsyncpa [#allocation6], 1
    %697 = vsyncpa [#allocation9], 1
    %698 = vsyncpa [#allocation12], 1
    %699 = vsyncpa [#allocation4], 1

</llo_original>
